<compile_context>
chip_gen: v7x
topology: tpu7x:2x2x1
jax: 0.10.0
libtpu: 0.0.40
codegen_flags: <defaults>
</compile_context>

<pallas_src>
import functools

import jax
import jax.numpy as jnp
from jax.experimental import pallas as pl
from jax.experimental.pallas import tpu as pltpu


# ----------------------------------------------------------------------------
# Kernel: fused moments -> closed-form mobius norm -> atanh -> lane accumulator
# ----------------------------------------------------------------------------
def _hyper_dist_kernel(c_ref, x_ref, y_ref, out_ref, acc_ref):
    i = pl.program_id(1)

    @pl.when(i == 0)
    def _():
        acc_ref[...] = jnp.zeros_like(acc_ref)

    c = c_ref[0]                                   # scalar curvature (SMEM)
    c_sqrt = jnp.sqrt(c)

    x = x_ref[...].astype(jnp.float32)             # (D, TN) tile (bf16/f32 in HBM)
    y = y_ref[...].astype(jnp.float32)

    # Per-sample moments; u = -x is never materialized (only <u,v> flips sign).
    x2 = jnp.sum(x * x, axis=0, keepdims=True)     # ||u||^2   (1, TN)
    y2 = jnp.sum(y * y, axis=0, keepdims=True)     # ||v||^2   (1, TN)
    xy = -jnp.sum(x * y, axis=0, keepdims=True)    # <u, v>    (1, TN)

    coef_u = 1.0 + 2.0 * c * xy + c * y2
    coef_v = 1.0 - c * x2
    denom = jnp.maximum(1.0 + 2.0 * c * xy + (c * c) * x2 * y2, 1e-15)

    # Closed-form ||mobius_add(-x, y, c)||^2 -- no second (D, TN) pass.
    num_sq = coef_u * coef_u * x2 + 2.0 * coef_u * coef_v * xy + coef_v * coef_v * y2
    norm_sq = jnp.maximum(num_sq, 0.0) / (denom * denom)   # clamp tiny negative cancellation
    add_norm = jnp.sqrt(norm_sq)                            # (1, TN)

    t = jnp.clip(c_sqrt * add_norm, -1.0 + 1e-5, 1.0 - 1e-5)
    # atanh(t) = 0.5 * log((1 + t) / (1 - t))  (one EUP log per lane)
    atanh_t = 0.5 * jnp.log((1.0 + t) / (1.0 - t))
    d = (2.0 / c_sqrt) * atanh_t                            # per-sample distance (1, TN)

    # Lane-aligned running sum: VALU add only, no per-step cross-lane reduce.
    # (Zero-padded columns give d == 0 and contribute nothing.)
    acc_ref[...] += d

    @pl.when(i == pl.num_programs(1) - 1)
    def _():
        total = jnp.sum(acc_ref[...])               # one cross-lane reduce per chunk
        out_ref[...] = jnp.broadcast_to(total, out_ref.shape)


# ----------------------------------------------------------------------------
# Wrapper
# ----------------------------------------------------------------------------
def _round_up(v, m):
    return ((v + m - 1) // m) * m


def hyper_cosine_distance(x, y, c, *, vmem_tile_bytes=12 * 1024 * 1024,
                          num_parallel_chunks=2):
    """Equivalent of HyperCosineDistance.forward(x, y) with curvature c.

    x, y: (D, N) arrays (any float dtype; streamed as-is, upcast in-kernel).
    Returns a scalar: mean hyperbolic distance over the N sample columns.
    """
    D, N = x.shape
    assert y.shape == (D, N), (x.shape, y.shape)
    c_arr = jnp.asarray(c, jnp.float32).reshape(1)

    # Tile sizing: spend ~vmem_tile_bytes per grid step across both input
    # tiles; the pipeline double-buffers them (~2x resident), which stays well
    # under the 48 MiB scoped-VMEM limit on every generation (incl. v7x 64 MiB).
    bytes_per_col = D * (x.dtype.itemsize + y.dtype.itemsize)
    if bytes_per_col * 128 > vmem_tile_bytes:
        # TODO(synk): for very large D, tile the feature axis with carried
        # x2/y2/xy partial accumulators instead of a single-pass reduction.
        raise ValueError(f"feature dim D={D} too large for single-pass feature reduction")
    tn = (vmem_tile_bytes // bytes_per_col) // 128 * 128
    tn = max(128, min(tn, _round_up(N, 128)))

    n_tiles = (N + tn - 1) // tn
    p_chunks = max(1, min(num_parallel_chunks, n_tiles))   # 2 TCs on v7x
    steps = (n_tiles + p_chunks - 1) // p_chunks
    n_pad = p_chunks * steps * tn
    if n_pad != N:
        pad = n_pad - N
        x = jnp.pad(x, ((0, 0), (0, pad)))   # zero columns -> zero distance
        y = jnp.pad(y, ((0, 0), (0, pad)))

    partials = pl.pallas_call(
        _hyper_dist_kernel,
        out_shape=jax.ShapeDtypeStruct((p_chunks, 8, 128), jnp.float32),
        grid=(p_chunks, steps),
        in_specs=[
            pl.BlockSpec(memory_space=pltpu.MemorySpace.SMEM),           # c (scalar)
            pl.BlockSpec((D, tn), lambda p, i: (0, p * steps + i)),      # x tile
            pl.BlockSpec((D, tn), lambda p, i: (0, p * steps + i)),      # y tile
        ],
        out_specs=pl.BlockSpec((1, 8, 128), lambda p, i: (p, 0, 0)),     # per-chunk partial
        scratch_shapes=[pltpu.VMEM((1, tn), jnp.float32)],               # lane accumulator
        compiler_params=pltpu.CompilerParams(
            dimension_semantics=("parallel", "arbitrary"),
            vmem_limit_bytes=48 * 1024 * 1024,
        ),
    )(c_arr, x, y)

    # Every element of a chunk's (8, 128) slab holds that chunk's sum.
    return jnp.sum(partials[:, 0, 0]) / jnp.float32(N)


# ----------------------------------------------------------------------------
# Pure-JAX reference (mirrors the PyTorch forward)
# ----------------------------------------------------------------------------
def _reference(x, y, c):
    u = -x.T.astype(jnp.float32)                   # (N, D)
    v = y.T.astype(jnp.float32)
    x2 = jnp.sum(u * u, axis=-1, keepdims=True)
    y2 = jnp.sum(v * v, axis=-1, keepdims=True)
    xy = jnp.sum(u * v, axis=-1, keepdims=True)
    num = (1.0 + 2.0 * c * xy + c * y2) * u + (1.0 - c * x2) * v
    denom = jnp.maximum(1.0 + 2.0 * c * xy + c * c * x2 * y2, 1e-15)
    ma = num / denom
    add = jnp.sqrt(jnp.sum(ma * ma, axis=-1))
    c_sqrt = jnp.sqrt(c)
    t = jnp.clip(c_sqrt * add, -1.0 + 1e-5, 1.0 - 1e-5)
    d = 2.0 / c_sqrt * jnp.arctanh(t)
    return jnp.mean(d)


if __name__ == "__main__":
    key = jax.random.PRNGKey(0)
    kx, ky = jax.random.split(key)

    D, N = 32, 320            # x, y are (D, N); forward works on x.T, y.T
    x = jax.random.normal(kx, (D, N), dtype=jnp.float32) * 0.05
    y = jax.random.normal(ky, (D, N), dtype=jnp.float32) * 0.05
    c = jnp.float32(1.0)      # manifold curvature

    ref = _reference(x, y, c)

    # 1) default config: one large lane-aligned tile, grid (1, 1)
    loss = jax.jit(hyper_cosine_distance)(x, y, c)
    jax.block_until_ready(loss)
    assert loss.shape == () and bool(jnp.isfinite(loss))
    assert jnp.allclose(loss, ref, rtol=1e-4, atol=1e-5), (loss, ref)

    # 2) small-tile config: exercises the (parallel, arbitrary) 2x2 grid,
    #    per-chunk lane accumulator, and zero-column padding.
    loss_small = jax.jit(functools.partial(
        hyper_cosine_distance, vmem_tile_bytes=32 * 1024, num_parallel_chunks=2))(x, y, c)
    jax.block_until_ready(loss_small)
    assert jnp.allclose(loss_small, ref, rtol=1e-4, atol=1e-5), (loss_small, ref)

    # 3) bf16 inputs streamed as-is; kernel upcasts in VMEM (halved HBM bytes).
    loss_bf16 = jax.jit(hyper_cosine_distance)(
        x.astype(jnp.bfloat16), y.astype(jnp.bfloat16), c)
    jax.block_until_ready(loss_bf16)
    assert bool(jnp.isfinite(loss_bf16))

    print("KERNEL_OK")
</pallas_src>

<mosaic_0001>
module attributes {stable_mosaic.version = 11 : i64} {
  func.func @_hyper_dist_kernel(%arg0: i32, %arg1: i32, %arg2: memref<1xf32, #tpu.memory_space<smem>>, %arg3: memref<32x384xf32, #tpu.memory_space<vmem>>, %arg4: memref<32x384xf32, #tpu.memory_space<vmem>>, %arg5: memref<1x8x128xf32, #tpu.memory_space<vmem>>, %arg6: memref<1x384xf32, #tpu.memory_space<vmem>>) attributes {dimension_semantics = [#tpu.dimension_semantics<parallel>, #tpu.dimension_semantics<arbitrary>], iteration_bounds = array<i64: 1, 1>, scalar_prefetch = 0 : i64, scratch_operands = 1 : i64, tpu.core_type = #tpu.core_type<tc>, window_params = [{transform_indices = @transform_0, window_bounds = array<i64: 1>}, {transform_indices = @transform_1, window_bounds = array<i64: 32, 384>}, {transform_indices = @transform_2, window_bounds = array<i64: 32, 384>}, {transform_indices = @transform_3, window_bounds = array<i64: 1, 8, 128>}]} {
    %c0_i32 = arith.constant 0 : i32
    %0 = arith.cmpi eq, %arg1, %c0_i32 : i32
    %1 = arith.extui %0 : i1 to i32
    %c0_i32_0 = arith.constant 0 : i32
    %2 = arith.cmpi ne, %1, %c0_i32_0 : i32
    scf.if %2 {
      %cst_28 = arith.constant 0.000000e+00 : f32
      %80 = vector.broadcast %cst_28 : f32 to vector<1x384xf32>
      %c0_29 = arith.constant 0 : index
      %c0_30 = arith.constant 0 : index
      %81 = vector.load %arg6[%c0_29, %c0_30] : memref<1x384xf32, #tpu.memory_space<vmem>>, vector<1x384xf32>
      tpu.vector_store %arg6[%c0_29, %c0_30], %80 {strides = array<i32>} : memref<1x384xf32, #tpu.memory_space<vmem>>, vector<1x384xf32>,
    } else {
    }
    %c0 = arith.constant 0 : index
    %3 = memref.load %arg2[%c0] : memref<1xf32, #tpu.memory_space<smem>>
    %4 = math.sqrt %3 : f32
    %c0_1 = arith.constant 0 : index
    %c0_2 = arith.constant 0 : index
    %5 = vector.load %arg3[%c0_1, %c0_2] : memref<32x384xf32, #tpu.memory_space<vmem>>, vector<32x384xf32>
    %c0_3 = arith.constant 0 : index
    %c0_4 = arith.constant 0 : index
    %6 = vector.load %arg4[%c0_3, %c0_4] : memref<32x384xf32, #tpu.memory_space<vmem>>, vector<32x384xf32>
    %7 = arith.mulf %5, %5 : vector<32x384xf32>
    %cst = arith.constant dense<0.000000e+00> : vector<384xf32>
    %8 = vector.multi_reduction <add>, %7, %cst [0] : vector<32x384xf32> to vector<384xf32>
    %9 = vector.shape_cast %8 : vector<384xf32> to vector<1x384xf32>
    %10 = arith.mulf %6, %6 : vector<32x384xf32>
    %cst_5 = arith.constant dense<0.000000e+00> : vector<384xf32>
    %11 = vector.multi_reduction <add>, %10, %cst_5 [0] : vector<32x384xf32> to vector<384xf32>
    %12 = vector.shape_cast %11 : vector<384xf32> to vector<1x384xf32>
    %13 = arith.mulf %5, %6 : vector<32x384xf32>
    %cst_6 = arith.constant dense<0.000000e+00> : vector<384xf32>
    %14 = vector.multi_reduction <add>, %13, %cst_6 [0] : vector<32x384xf32> to vector<384xf32>
    %15 = vector.shape_cast %14 : vector<384xf32> to vector<1x384xf32>
    %cst_7 = arith.constant 0.000000e+00 : f32
    %16 = vector.broadcast %cst_7 : f32 to vector<1x384xf32>
    %17 = arith.subf %16, %15 : vector<1x384xf32>
    %cst_8 = arith.constant 2.000000e+00 : f32
    %18 = arith.mulf %cst_8, %3 : f32
    %19 = vector.broadcast %18 : f32 to vector<1x384xf32>
    %20 = arith.mulf %19, %17 : vector<1x384xf32>
    %cst_9 = arith.constant 1.000000e+00 : f32
    %21 = vector.broadcast %cst_9 : f32 to vector<1x384xf32>
    %22 = arith.addf %21, %20 : vector<1x384xf32>
    %23 = vector.broadcast %3 : f32 to vector<1x384xf32>
    %24 = arith.mulf %23, %12 : vector<1x384xf32>
    %25 = arith.addf %22, %24 : vector<1x384xf32>
    %26 = vector.broadcast %3 : f32 to vector<1x384xf32>
    %27 = arith.mulf %26, %9 : vector<1x384xf32>
    %cst_10 = arith.constant 1.000000e+00 : f32
    %28 = vector.broadcast %cst_10 : f32 to vector<1x384xf32>
    %29 = arith.subf %28, %27 : vector<1x384xf32>
    %cst_11 = arith.constant 2.000000e+00 : f32
    %30 = arith.mulf %cst_11, %3 : f32
    %31 = vector.broadcast %30 : f32 to vector<1x384xf32>
    %32 = arith.mulf %31, %17 : vector<1x384xf32>
    %cst_12 = arith.constant 1.000000e+00 : f32
    %33 = vector.broadcast %cst_12 : f32 to vector<1x384xf32>
    %34 = arith.addf %33, %32 : vector<1x384xf32>
    %35 = arith.mulf %3, %3 : f32
    %36 = vector.broadcast %35 : f32 to vector<1x384xf32>
    %37 = arith.mulf %36, %9 : vector<1x384xf32>
    %38 = arith.mulf %37, %12 : vector<1x384xf32>
    %39 = arith.addf %34, %38 : vector<1x384xf32>
    %cst_13 = arith.constant 1.000000e-15 : f32
    %40 = vector.broadcast %cst_13 : f32 to vector<1x384xf32>
    %41 = arith.maximumf %39, %40 : vector<1x384xf32>
    %42 = arith.mulf %25, %25 : vector<1x384xf32>
    %43 = arith.mulf %42, %9 : vector<1x384xf32>
    %cst_14 = arith.constant 2.000000e+00 : f32
    %44 = vector.broadcast %cst_14 : f32 to vector<1x384xf32>
    %45 = arith.mulf %44, %25 : vector<1x384xf32>
    %46 = arith.mulf %45, %29 : vector<1x384xf32>
    %47 = arith.mulf %46, %17 : vector<1x384xf32>
    %48 = arith.addf %43, %47 : vector<1x384xf32>
    %49 = arith.mulf %29, %29 : vector<1x384xf32>
    %50 = arith.mulf %49, %12 : vector<1x384xf32>
    %51 = arith.addf %48, %50 : vector<1x384xf32>
    %cst_15 = arith.constant 0.000000e+00 : f32
    %52 = vector.broadcast %cst_15 : f32 to vector<1x384xf32>
    %53 = arith.maximumf %51, %52 : vector<1x384xf32>
    %54 = arith.mulf %41, %41 : vector<1x384xf32>
    %55 = arith.divf %53, %54 : vector<1x384xf32>
    %56 = math.sqrt %55 : vector<1x384xf32>
    %57 = vector.broadcast %4 : f32 to vector<1x384xf32>
    %58 = arith.mulf %57, %56 : vector<1x384xf32>
    %cst_16 = arith.constant -0.999989986 : f32
    %cst_17 = arith.constant 0.999989986 : f32
    %59 = vector.broadcast %cst_16 : f32 to vector<1x384xf32>
    %60 = arith.maximumf %59, %58 : vector<1x384xf32>
    %61 = vector.broadcast %cst_17 : f32 to vector<1x384xf32>
    %62 = arith.minimumf %61, %60 : vector<1x384xf32>
    %cst_18 = arith.constant 1.000000e+00 : f32
    %63 = vector.broadcast %cst_18 : f32 to vector<1x384xf32>
    %64 = arith.addf %63, %62 : vector<1x384xf32>
    %cst_19 = arith.constant 1.000000e+00 : f32
    %65 = vector.broadcast %cst_19 : f32 to vector<1x384xf32>
    %66 = arith.subf %65, %62 : vector<1x384xf32>
    %67 = arith.divf %64, %66 : vector<1x384xf32>
    %68 = math.log %67 : vector<1x384xf32>
    %cst_20 = arith.constant 5.000000e-01 : f32
    %69 = vector.broadcast %cst_20 : f32 to vector<1x384xf32>
    %70 = arith.mulf %69, %68 : vector<1x384xf32>
    %cst_21 = arith.constant 2.000000e+00 : f32
    %71 = arith.divf %cst_21, %4 : f32
    %72 = vector.broadcast %71 : f32 to vector<1x384xf32>
    %73 = arith.mulf %72, %70 : vector<1x384xf32>
    %c0_22 = arith.constant 0 : index
    %c0_23 = arith.constant 0 : index
    %74 = vector.load %arg6[%c0_22, %c0_23] : memref<1x384xf32, #tpu.memory_space<vmem>>, vector<1x384xf32>
    %75 = arith.addf %74, %73 : vector<1x384xf32>
    %c0_24 = arith.constant 0 : index
    %c0_25 = arith.constant 0 : index
    %76 = vector.load %arg6[%c0_24, %c0_25] : memref<1x384xf32, #tpu.memory_space<vmem>>, vector<1x384xf32>
    tpu.vector_store %arg6[%c0_24, %c0_25], %75 {strides = array<i32>} : memref<1x384xf32, #tpu.memory_space<vmem>>, vector<1x384xf32>,
    %c0_i32_26 = arith.constant 0 : i32
    %77 = arith.cmpi eq, %arg1, %c0_i32_26 : i32
    %78 = arith.extui %77 : i1 to i32
    %c0_i32_27 = arith.constant 0 : i32
    %79 = arith.cmpi ne, %78, %c0_i32_27 : i32
    scf.if %79 {
      %c0_28 = arith.constant 0 : index
      %c0_29 = arith.constant 0 : index
      %80 = vector.load %arg6[%c0_28, %c0_29] : memref<1x384xf32, #tpu.memory_space<vmem>>, vector<1x384xf32>
      %81 = vector.shape_cast %80 : vector<1x384xf32> to vector<1x1x384xf32>
      %cst_30 = arith.constant dense<0.000000e+00> : vector<1xf32>
      %82 = vector.multi_reduction <add>, %81, %cst_30 [1, 2] : vector<1x1x384xf32> to vector<1xf32>
      %83 = vector.shape_cast %82 : vector<1xf32> to vector<1x1x1xf32>
      %84 = vector.extract %83[0, 0, 0] : f32 from vector<1x1x1xf32>
      %85 = vector.broadcast %84 : f32 to vector<1x8x128xf32>
      %c0_31 = arith.constant 0 : index
      %c0_32 = arith.constant 0 : index
      %c0_33 = arith.constant 0 : index
      %86 = vector.load %arg5[%c0_31, %c0_32, %c0_33] : memref<1x8x128xf32, #tpu.memory_space<vmem>>, vector<1x8x128xf32>
      tpu.vector_store %arg5[%c0_31, %c0_32, %c0_33], %85 {strides = array<i32>} : memref<1x8x128xf32, #tpu.memory_space<vmem>>, vector<1x8x128xf32>,
    } else {
    }
    return
  }
  func.func @transform_0(%arg0: i32, %arg1: i32) -> i32 {
    %c0_i32 = arith.constant 0 : i32
    %c0_i32_0 = arith.constant 0 : i32
    return %c0_i32 : i32
  }
  func.func @transform_1(%arg0: i32, %arg1: i32) -> (i32, i32) {
    %c1_i32 = arith.constant 1 : i32
    %0 = arith.muli %arg0, %c1_i32 : i32
    %1 = arith.addi %0, %arg1 : i32
    %c0_i32 = arith.constant 0 : i32
    %c0_i32_0 = arith.constant 0 : i32
    return %c0_i32, %1 : i32, i32
  }
  func.func @transform_2(%arg0: i32, %arg1: i32) -> (i32, i32) {
    %c1_i32 = arith.constant 1 : i32
    %0 = arith.muli %arg0, %c1_i32 : i32
    %1 = arith.addi %0, %arg1 : i32
    %c0_i32 = arith.constant 0 : i32
    %c0_i32_0 = arith.constant 0 : i32
    return %c0_i32, %1 : i32, i32
  }
  func.func @transform_3(%arg0: i32, %arg1: i32) -> (i32, i32, i32) {
    %c0_i32 = arith.constant 0 : i32
    %c0_i32_0 = arith.constant 0 : i32
    %c0_i32_1 = arith.constant 0 : i32
    return %arg0, %c0_i32, %c0_i32_0 : i32, i32, i32
  }
}

</mosaic_0001>

<llo_original>
// kernel: hyper_cosine_distance.1
$region0: #{hyper_cosine_distance.1}
  #allocation0 [shape = 'u32[]', space=smem, size = 0x4, offset = 0x4, fixed_abs, tag = 'smem constant byte address 0x4 - core index']
  #allocation1 [shape = 'u32[144,128]{1,0:T(1,128)}', space=vmem, size = 0x12000, scoped, tag = 'internal scratch']
  #allocation2 [shape = 'f32[1,384]{1,0:T(1,128)}', space=vmem, size = 0x600, scoped, tag = 'scratch operand']
  #allocation3 [shape = 'f32[1]{0:T(128)S(6)}', space=smem, size = 0x200, scoped, tag = 'scoped memory for hyper_cosine_distance.1']
  %s0 = inlined_call_operand.<no memory space> [shape: f32[1], index: 0, kind: input, shape index: {}]
  %s1 = inlined_call_operand.vmem [shape: f32[32,384], index: 1, kind: input, shape index: {}]
  %s2 = inlined_call_operand.vmem [shape: f32[32,384], index: 2, kind: input, shape index: {}]
  %s3 = inlined_call_operand.vmem [shape: f32[1,8,128], index: 3, kind: output, shape index: {}]
  %s4 = sld [smem:[#allocation0]]
  $region30: #{hyper_cosine_distance.1} parent=0
    _
  %s6 = ssub.s32 1, %s4
  %s7 = scalar_select 0, %s6, %s4
  %8 = sst [smem:[#allocation3]] %s0
  // Predicated region
  $region2: #{hyper_cosine_distance.1} parent=0 // pred_check
    _
  $region3: #{hyper_cosine_distance.1} parent=0 // pred_check_branch
    %10 = sbr.rel (0) target = $region5
  $region4: #{hyper_cosine_distance.1} parent=0 // pred_region
    _
  $region5: #{hyper_cosine_distance.1} parent=0 // pred_fallthru
    _
  // Predicated region
  $region6: #{hyper_cosine_distance.1} parent=0 // pred_check
    _
  $region7: #{hyper_cosine_distance.1} parent=0 // pred_check_branch
    %12 = sbr.rel (0) target = $region9
  $region8: #{hyper_cosine_distance.1} parent=0 // pred_region
    %s13 = sadd.s32 0, 0
    %s14 = smul.u32 3, %s13
    %p15 = scmp.lt.s32.totalorder %s14, 2
    %s16 = scalar_select %p15, %s14, 2
    %s17 = smul.addr %s16, 8
    %s18 = scalar_lea.vmem %s1, %s17
    %s19 = sadd.s32 0, 0
    %s20 = smul.u32 3, %s19
  $region9: #{hyper_cosine_distance.1} parent=0 // pred_fallthru
    _
  // Predicated region
  $region10: #{hyper_cosine_distance.1} parent=0 // pred_check
    _
  $region11: #{hyper_cosine_distance.1} parent=0 // pred_check_branch
    %22 = sbr.rel (0) target = $region13
  $region12: #{hyper_cosine_distance.1} parent=0 // pred_region
    %s23 = sadd.s32 0, 0
    %s24 = smul.u32 3, %s23
    %p25 = scmp.lt.s32.totalorder %s24, 2
    %s26 = scalar_select %p25, %s24, 2
    %s27 = smul.addr %s26, 8
    %s28 = scalar_lea.vmem %s2, %s27
    %s29 = sadd.s32 0, 0
    %s30 = smul.u32 3, %s29
  $region13: #{hyper_cosine_distance.1} parent=0 // pred_fallthru
    _
  %s31 = sadd.s32 0, 0
  %s32 = smul.u32 3, %s31
  %p33 = scmp.lt.s32.totalorder %s32, 2
  %s34 = scalar_select %p33, %s32, 2
  %s35 = smul.addr %s34, 8
  %s36 = scalar_lea.vmem %s1, %s35
  %s37 = sadd.s32 0, 0
  %s38 = smul.u32 3, %s37
  %p39 = scmp.lt.s32.totalorder %s38, 2
  %s40 = scalar_select %p39, %s38, 2
  %s41 = smul.addr %s40, 8
  %s42 = scalar_lea.vmem %s2, %s41
  %s43 = sadd.s32 0, 0
  %s44 = smul.u32 3, %s43
  %p45 = scmp.lt.s32.totalorder %s44, 2
  %s46 = scalar_select %p45, %s44, 2
  %s47 = smul.addr %s46, 8
  %s48 = scalar_lea.vmem %s1, %s47
  %s49 = sadd.s32 0, 0
  %s50 = smul.u32 3, %s49
  %s51 = sadd.s32 0, 0
  %s52 = smul.u32 3, %s51
  %p53 = scmp.lt.s32.totalorder %s52, 2
  %s54 = scalar_select %p53, %s52, 2
  %s55 = smul.addr %s54, 8
  %s56 = scalar_lea.vmem %s2, %s55
  %s57 = sadd.s32 0, 0
  %s58 = smul.u32 3, %s57
  %p59 = scmp.eq.s32.totalorder 0, 0
  // Predicated region
  $region14: #{hyper_cosine_distance.1} parent=0 // pred_check
    %p60 = pneg %p59
  $region15: #{hyper_cosine_distance.1} parent=0 // pred_check_branch
    %62 = sbr.rel (%p60) target = $region17
  $region16: #{hyper_cosine_distance.1} parent=0 // pred_region
    %v63 = vlaneseq
    %vm64 = vcmp.ge.s32.totalorder %v63, 0
    %vm65 = vcmp.lt.s32.totalorder %v63, 384
    %vm66 = vmand %vm64, %vm65
    %67 = vst.msk [vmem:[#allocation2] sm:$0x7] %vm66, 0.0
  $region17: #{hyper_cosine_distance.1} parent=0 // pred_fallthru
    _
  %s68 = sld [smem:[#allocation3]]
  %v69 = vstv %s68
  %v70 = vrsqrt.pop %v69
  %v71 = vmul.f32 %v69, %v70
  %vm72 = vcmp.eq.f32.partialorder %v69, inf
  %v73 = vsel %vm72, %v69, %v71
  %vm74 = vcmp.eq.f32.partialorder %v69, 0.0
  %v75 = vand.u32 %v69, 2147483648
  %v76 = vsel %vm74, %v75, %v73
  %s77 = vtos %v76
  %v78 = vld [vmem:[%s48] sm:$0xff]
  %v79 = vld [vmem:[%s48 + $0x8] sm:$0xff]
  %v80 = vld [vmem:[%s48 + $0x10] sm:$0xff]
  %v81 = vld [vmem:[%s48 + $0x18] sm:$0xff]
  %v82 = vld [vmem:[%s48 + $0x20] sm:$0xff]
  %v83 = vld [vmem:[%s48 + $0x28] sm:$0xff]
  %v84 = vld [vmem:[%s48 + $0x30] sm:$0xff]
  %v85 = vld [vmem:[%s48 + $0x38] sm:$0xff]
  %v86 = vld [vmem:[%s48 + $0x40] sm:$0xff]
  %v87 = vld [vmem:[%s48 + $0x48] sm:$0xff]
  %v88 = vld [vmem:[%s48 + $0x50] sm:$0xff]
  %v89 = vld [vmem:[%s48 + $0x58] sm:$0xff]
  %v90 = vld [vmem:[%s56] sm:$0xff]
  %v91 = vld [vmem:[%s56 + $0x8] sm:$0xff]
  %v92 = vld [vmem:[%s56 + $0x10] sm:$0xff]
  %v93 = vld [vmem:[%s56 + $0x18] sm:$0xff]
  %v94 = vld [vmem:[%s56 + $0x20] sm:$0xff]
  %v95 = vld [vmem:[%s56 + $0x28] sm:$0xff]
  %v96 = vld [vmem:[%s56 + $0x30] sm:$0xff]
  %v97 = vld [vmem:[%s56 + $0x38] sm:$0xff]
  %v98 = vld [vmem:[%s56 + $0x40] sm:$0xff]
  %v99 = vld [vmem:[%s56 + $0x48] sm:$0xff]
  %v100 = vld [vmem:[%s56 + $0x50] sm:$0xff]
  %v101 = vld [vmem:[%s56 + $0x58] sm:$0xff]
  %v102 = vmul.f32 %v78, %v78
  %v103 = vmul.f32 %v79, %v79
  %v104 = vmul.f32 %v80, %v80
  %v105 = vmul.f32 %v81, %v81
  %v106 = vmul.f32 %v82, %v82
  %v107 = vmul.f32 %v83, %v83
  %v108 = vmul.f32 %v84, %v84
  %v109 = vmul.f32 %v85, %v85
  %v110 = vmul.f32 %v86, %v86
  %v111 = vmul.f32 %v87, %v87
  %v112 = vmul.f32 %v88, %v88
  %v113 = vmul.f32 %v89, %v89
  %v114 = vadd.f32 %v102, %v105
  %v115 = vadd.f32 %v114, %v108
  %v116 = vadd.f32 %v115, %v111
  %v117 = vrot.slane %v116, 4
  %v118 = vadd.f32 %v116, %v117
  %v119 = vrot.slane %v118, 2
  %v120 = vadd.f32 %v118, %v119
  %v121 = vrot.slane %v120, 1
  %v122 = vadd.f32 %v120, %v121
  %v123 = vadd.f32 %v103, %v106
  %v124 = vadd.f32 %v123, %v109
  %v125 = vadd.f32 %v124, %v112
  %v126 = vrot.slane %v125, 4
  %v127 = vadd.f32 %v125, %v126
  %v128 = vrot.slane %v127, 2
  %v129 = vadd.f32 %v127, %v128
  %v130 = vrot.slane %v129, 1
  %v131 = vadd.f32 %v129, %v130
  %v132 = vadd.f32 %v104, %v107
  %v133 = vadd.f32 %v132, %v110
  %v134 = vadd.f32 %v133, %v113
  %v135 = vrot.slane %v134, 4
  %v136 = vadd.f32 %v134, %v135
  %v137 = vrot.slane %v136, 2
  %v138 = vadd.f32 %v136, %v137
  %v139 = vrot.slane %v138, 1
  %v140 = vadd.f32 %v138, %v139
  %v141 = vmul.f32 %v90, %v90
  %v142 = vmul.f32 %v91, %v91
  %v143 = vmul.f32 %v92, %v92
  %v144 = vmul.f32 %v93, %v93
  %v145 = vmul.f32 %v94, %v94
  %v146 = vmul.f32 %v95, %v95
  %v147 = vmul.f32 %v96, %v96
  %v148 = vmul.f32 %v97, %v97
  %v149 = vmul.f32 %v98, %v98
  %v150 = vmul.f32 %v99, %v99
  %v151 = vmul.f32 %v100, %v100
  %v152 = vmul.f32 %v101, %v101
  %v153 = vadd.f32 %v141, %v144
  %v154 = vadd.f32 %v153, %v147
  %v155 = vadd.f32 %v154, %v150
  %v156 = vrot.slane %v155, 4
  %v157 = vadd.f32 %v155, %v156
  %v158 = vrot.slane %v157, 2
  %v159 = vadd.f32 %v157, %v158
  %v160 = vrot.slane %v159, 1
  %v161 = vadd.f32 %v159, %v160
  %v162 = vadd.f32 %v142, %v145
  %v163 = vadd.f32 %v162, %v148
  %v164 = vadd.f32 %v163, %v151
  %v165 = vrot.slane %v164, 4
  %v166 = vadd.f32 %v164, %v165
  %v167 = vrot.slane %v166, 2
  %v168 = vadd.f32 %v166, %v167
  %v169 = vrot.slane %v168, 1
  %v170 = vadd.f32 %v168, %v169
  %v171 = vadd.f32 %v143, %v146
  %v172 = vadd.f32 %v171, %v149
  %v173 = vadd.f32 %v172, %v152
  %v174 = vrot.slane %v173, 4
  %v175 = vadd.f32 %v173, %v174
  %v176 = vrot.slane %v175, 2
  %v177 = vadd.f32 %v175, %v176
  %v178 = vrot.slane %v177, 1
  %v179 = vadd.f32 %v177, %v178
  %v180 = vmul.f32 %v78, %v90
  %v181 = vmul.f32 %v79, %v91
  %v182 = vmul.f32 %v80, %v92
  %v183 = vmul.f32 %v81, %v93
  %v184 = vmul.f32 %v82, %v94
  %v185 = vmul.f32 %v83, %v95
  %v186 = vmul.f32 %v84, %v96
  %v187 = vmul.f32 %v85, %v97
  %v188 = vmul.f32 %v86, %v98
  %v189 = vmul.f32 %v87, %v99
  %v190 = vmul.f32 %v88, %v100
  %v191 = vmul.f32 %v89, %v101
  %v192 = vadd.f32 %v180, %v183
  %v193 = vadd.f32 %v192, %v186
  %v194 = vadd.f32 %v193, %v189
  %v195 = vrot.slane %v194, 4
  %v196 = vadd.f32 %v194, %v195
  %v197 = vrot.slane %v196, 2
  %v198 = vadd.f32 %v196, %v197
  %v199 = vrot.slane %v198, 1
  %v200 = vadd.f32 %v198, %v199
  %v201 = vadd.f32 %v181, %v184
  %v202 = vadd.f32 %v201, %v187
  %v203 = vadd.f32 %v202, %v190
  %v204 = vrot.slane %v203, 4
  %v205 = vadd.f32 %v203, %v204
  %v206 = vrot.slane %v205, 2
  %v207 = vadd.f32 %v205, %v206
  %v208 = vrot.slane %v207, 1
  %v209 = vadd.f32 %v207, %v208
  %v210 = vadd.f32 %v182, %v185
  %v211 = vadd.f32 %v210, %v188
  %v212 = vadd.f32 %v211, %v191
  %v213 = vrot.slane %v212, 4
  %v214 = vadd.f32 %v212, %v213
  %v215 = vrot.slane %v214, 2
  %v216 = vadd.f32 %v214, %v215
  %v217 = vrot.slane %v216, 1
  %v218 = vadd.f32 %v216, %v217
  %v219 = vsub.f32 0.0, %v200
  %v220 = vsub.f32 0.0, %v209
  %v221 = vsub.f32 0.0, %v218
  %s222 = smul.f32 %s68, 2.0
  %v223 = vstv %s222
  %v224 = vmul.f32 %v223, %v219
  %v225 = vmul.f32 %v223, %v220
  %v226 = vmul.f32 %v223, %v221
  %v227 = vadd.f32 %v224, 1.0
  %v228 = vadd.f32 %v225, 1.0
  %v229 = vadd.f32 %v226, 1.0
  %v230 = vstv %s68
  %v231 = vmul.f32 %v230, %v161
  %v232 = vmul.f32 %v230, %v170
  %v233 = vmul.f32 %v230, %v179
  %v234 = vadd.f32 %v227, %v231
  %v235 = vadd.f32 %v228, %v232
  %v236 = vadd.f32 %v229, %v233
  %v237 = vmul.f32 %v230, %v122
  %v238 = vmul.f32 %v230, %v131
  %v239 = vmul.f32 %v230, %v140
  %v240 = vsub.f32 1.0, %v237
  %v241 = vsub.f32 1.0, %v238
  %v242 = vsub.f32 1.0, %v239
  %s243 = smul.f32 %s68, %s68
  %v244 = vstv %s243
  %v245 = vmul.f32 %v244, %v122
  %v246 = vmul.f32 %v244, %v131
  %v247 = vmul.f32 %v244, %v140
  %v248 = vmul.f32 %v245, %v161
  %v249 = vmul.f32 %v246, %v170
  %v250 = vmul.f32 %v247, %v179
  %v251 = vadd.f32 %v227, %v248
  %v252 = vadd.f32 %v228, %v249
  %v253 = vadd.f32 %v229, %v250
  %v254 = vmax.f32 %v251, 1e-15
  %v255 = vmax.f32 %v252, 1e-15
  %v256 = vmax.f32 %v253, 1e-15
  %v257 = vmul.f32 %v234, %v234
  %v258 = vmul.f32 %v235, %v235
  %v259 = vmul.f32 %v236, %v236
  %v260 = vmul.f32 %v257, %v122
  %v261 = vmul.f32 %v258, %v131
  %v262 = vmul.f32 %v259, %v140
  %v263 = vmul.f32 %v234, 2.0
  %v264 = vmul.f32 %v235, 2.0
  %v265 = vmul.f32 %v236, 2.0
  %v266 = vmul.f32 %v263, %v240
  %v267 = vmul.f32 %v264, %v241
  %v268 = vmul.f32 %v265, %v242
  %v269 = vmul.f32 %v266, %v219
  %v270 = vmul.f32 %v267, %v220
  %v271 = vmul.f32 %v268, %v221
  %v272 = vadd.f32 %v260, %v269
  %v273 = vadd.f32 %v261, %v270
  %v274 = vadd.f32 %v262, %v271
  %v275 = vmul.f32 %v240, %v240
  %v276 = vmul.f32 %v241, %v241
  %v277 = vmul.f32 %v242, %v242
  %v278 = vmul.f32 %v275, %v161
  %v279 = vmul.f32 %v276, %v170
  %v280 = vmul.f32 %v277, %v179
  %v281 = vadd.f32 %v272, %v278
  %v282 = vadd.f32 %v273, %v279
  %v283 = vadd.f32 %v274, %v280
  %v284 = vmax.f32 %v281, 0.0
  %v285 = vmax.f32 %v282, 0.0
  %v286 = vmax.f32 %v283, 0.0
  %v287 = vmul.f32 %v254, %v254
  %v288 = vmul.f32 %v255, %v255
  %v289 = vmul.f32 %v256, %v256
  %v290 = vrcp.pop %v287
  %v291 = vmul.f32 %v284, %v290
  %v292 = vrcp.pop %v288
  %v293 = vmul.f32 %v285, %v292
  %v294 = vrcp.pop %v289
  %v295 = vmul.f32 %v286, %v294
  %v296 = vrsqrt.pop %v291
  %v297 = vmul.f32 %v291, %v296
  %vm298 = vcmp.eq.f32.partialorder %v291, inf
  %v299 = vsel %vm298, %v291, %v297
  %vm300 = vcmp.eq.f32.partialorder %v291, 0.0
  %v301 = vand.u32 %v291, 2147483648
  %v302 = vsel %vm300, %v301, %v299
  %v303 = vrsqrt.pop %v293
  %v304 = vmul.f32 %v293, %v303
  %vm305 = vcmp.eq.f32.partialorder %v293, inf
  %v306 = vsel %vm305, %v293, %v304
  %vm307 = vcmp.eq.f32.partialorder %v293, 0.0
  %v308 = vand.u32 %v293, 2147483648
  %v309 = vsel %vm307, %v308, %v306
  %v310 = vrsqrt.pop %v295
  %v311 = vmul.f32 %v295, %v310
  %vm312 = vcmp.eq.f32.partialorder %v295, inf
  %v313 = vsel %vm312, %v295, %v311
  %vm314 = vcmp.eq.f32.partialorder %v295, 0.0
  %v315 = vand.u32 %v295, 2147483648
  %v316 = vsel %vm314, %v315, %v313
  %v317 = vstv %s77
  %v318 = vmul.f32 %v317, %v302
  %v319 = vmul.f32 %v317, %v309
  %v320 = vmul.f32 %v317, %v316
  %v321 = vmax.f32 %v318, -0.99999
  %v322 = vmax.f32 %v319, -0.99999
  %v323 = vmax.f32 %v320, -0.99999
  %v324 = vmin.f32 %v321, 0.99999
  %v325 = vmin.f32 %v322, 0.99999
  %v326 = vmin.f32 %v323, 0.99999
  %v327 = vadd.f32 %v324, 1.0
  %v328 = vadd.f32 %v325, 1.0
  %v329 = vadd.f32 %v326, 1.0
  %v330 = vsub.f32 1.0, %v324
  %v331 = vsub.f32 1.0, %v325
  %v332 = vsub.f32 1.0, %v326
  %v333 = vrcp.pop %v330
  %v334 = vmul.f32 %v327, %v333
  %v335 = vrcp.pop %v331
  %v336 = vmul.f32 %v328, %v335
  %v337 = vrcp.pop %v332
  %v338 = vmul.f32 %v329, %v337
  %v339 = vlog2.pop %v334
  %v340 = vmul.f32 %v339, 0.6931472
  %v341 = vlog2.pop %v336
  %v342 = vmul.f32 %v341, 0.6931472
  %v343 = vlog2.pop %v338
  %v344 = vmul.f32 %v343, 0.6931472
  %v345 = vmul.f32 %v340, 0.5
  %v346 = vmul.f32 %v342, 0.5
  %v347 = vmul.f32 %v344, 0.5
  %v348 = vstv %s77
  %v349 = vrcp.pop %v348
  %s350 = vtos %v349
  %s351 = smul.f32 2.0, %s350
  %v352 = vstv %s351
  %v353 = vmul.f32 %v352, %v345
  %v354 = vmul.f32 %v352, %v346
  %v355 = vmul.f32 %v352, %v347
  %v356 = vld [vmem:[#allocation2] sm:$0x7]
  %v360 = vcombine.low %v353, %v354
  %v362 = vunpack.c.l.s4 1966171168
  %v363 = vunpack.c.0.s8 %v362
  %v364 = vlaneseq
  %v365 = vshrl.u32 %v364, 7
  %v366 = vsub.s32 %v363, %v365
  %v367 = vrot.slane %v360, %v366
  %v369 = vunpack.c.l.s4 1966171168
  %v370 = vunpack.c.0.s8 %v369
  %v371 = vlaneseq
  %v372 = vshrl.u32 %v371, 7
  %v373 = vsub.s32 %v370, %v372
  %v374 = vrot.slane %v355, %v373
  %v375 = vcombine.low %v367, %v374
  %v377 = vunpack.c.l.s4 1966171168
  %v378 = vunpack.c.0.s8 %v377
  %v379 = vlaneseq
  %v380 = vshrl.u32 %v379, 7
  %v381 = vsub.s32 %v378, %v380
  %v382 = vrot.slane %v375, %v381
  %v384 = vadd.f32 %v356, %v382
  %v385 = vlaneseq
  %vm386 = vcmp.ge.s32.totalorder %v385, 0
  %vm387 = vcmp.lt.s32.totalorder %v385, 384
  %vm388 = vmand %vm386, %vm387
  %389 = vst.msk [vmem:[#allocation2] sm:$0x7] %vm388, %v384
  // Predicated region
  $region18: #{hyper_cosine_distance.1} parent=0 // pred_check
    %p390 = pneg %p59
  $region19: #{hyper_cosine_distance.1} parent=0 // pred_check_branch
    %392 = sbr.rel (%p390) target = $region21
  $region20: #{hyper_cosine_distance.1} parent=0 // pred_region
    %v393 = vld [vmem:[#allocation2] sm:$0x7]
    %v395 = vlaneseq
    %v396 = vshrl.u32 %v395, 7
    %v397 = vsub.s32 0, %v396
    %v398 = vrot.slane %v393, %v397
    %v399 = vlaneseq
    %v400 = vshrl.u32 %v399, 7
    %v401 = vsub.s32 1, %v400
    %v402 = vrot.slane %v393, %v401
    %v403 = vlaneseq
    %v404 = vshrl.u32 %v403, 7
    %v405 = vsub.s32 2, %v404
    %v406 = vrot.slane %v393, %v405
    %vm410 = vcmask 1040384
    %v411 = vsel %vm410, %v398, 0.0
    %v412 = vsel %vm410, %v402, 0.0
    %v413 = vadd.f32 %v411, %v412
    %v414 = vsel %vm410, %v406, 0.0
    %v415 = vadd.f32 %v413, %v414
    %416 = vadd.xlane.f32.xlu0 %v415
    %v417 = vpop.xlane.xlu0 %416
    %v418 = vrot.slane %v417, 4
    %v419 = vadd.f32 %v417, %v418
    %v420 = vrot.slane %v419, 2
    %v421 = vadd.f32 %v419, %v420
    %v422 = vrot.slane %v421, 1
    %v423 = vadd.f32 %v421, %v422
    %s424 = vtos %v423
    %v425 = vstv %s424
    %426 = vst [vmem:[%s3] sm:$0xff] %v425
  $region21: #{hyper_cosine_distance.1} parent=0 // pred_fallthru
    _
  // Predicated region
  $region22: #{hyper_cosine_distance.1} parent=0 // pred_check
    _
  $region23: #{hyper_cosine_distance.1} parent=0 // pred_check_branch
    %428 = sbr.rel (0) target = $region25
  $region24: #{hyper_cosine_distance.1} parent=0 // pred_region
    _
  $region25: #{hyper_cosine_distance.1} parent=0 // pred_fallthru
    _
  // Predicated region
  $region26: #{hyper_cosine_distance.1} parent=0 // pred_check
    _
  $region27: #{hyper_cosine_distance.1} parent=0 // pred_check_branch
    %430 = sbr.rel (0) target = $region29
  $region28: #{hyper_cosine_distance.1} parent=0 // pred_region
    _
  $region29: #{hyper_cosine_distance.1} parent=0 // pred_fallthru
    _

</llo_original>
